<compile_context>
chip_gen: v5e
topology: v5e:2x2
jax: 0.10.0
libtpu: 0.0.40
codegen_flags: <defaults>
</compile_context>

<pallas_src>
import jax
import jax.numpy as jnp
from jax.experimental import pallas as pl
from jax.experimental.pallas import tpu as pltpu


def _dc_kernel(rec_ref, uk_ref, mb_ref, out_ref):
    # rec/uk/out: (1, C, tH, W);  mb: (1, 1, tH, 128) = b*mask lane-broadcast.
    rec = rec_ref[...].astype(jnp.float32)
    uk = uk_ref[...].astype(jnp.float32)
    mb = mb_ref[:, :, :, 0:1]                 # (1, 1, tH, 1): broadcasts over C, W
    out_ref[...] = (rec + mb * (uk - rec)).astype(out_ref.dtype)


def _cdiv(a, b):
    return -(-a // b)


def _block_vmem_bytes(C, tH, W, itemsize):
    """Double-buffered VMEM footprint of one grid step, with (8,128) padding."""
    th_p = _cdiv(tH, 8) * 8
    w_p = _cdiv(W, 128) * 128
    big = C * th_p * w_p * itemsize           # one rec / u_k / out buffer
    mb = th_p * 128 * 4                       # one lane-dense f32 mask buffer
    return 2 * (3 * big + mb)                 # x2 for double-buffering


def _choose_h_tile(B, C, H, W, itemsize,
                   vmem_budget_bytes=12 * 1024 * 1024,   # < v5e's 16 MiB default
                   min_steps=4):
    """Pick tH (multiple of 8, or H itself); prefer >=min_steps even grid steps."""
    if H <= 8:
        return H
    cands = sorted({H} | set(range(8, H + 1, 8)), reverse=True)
    fitting = [t for t in cands
               if _block_vmem_bytes(C, t, W, itemsize) <= vmem_budget_bytes]
    if not fitting:
        fitting = [cands[-1]]                 # smallest; explicit vmem_limit covers it

    def steps(t):
        return B * _cdiv(H, t)

    # Largest tile satisfying the strongest condition we can:
    #   (a) >=min_steps steps and even  -> both v7x cores get >=2 overlapped blocks
    #   (b) >=min_steps steps
    #   (c) >=2 steps                   -> at least some pipelining
    #   (d) anything that fits
    for cond in (lambda t: steps(t) >= min_steps and steps(t) % 2 == 0,
                 lambda t: steps(t) >= min_steps,
                 lambda t: steps(t) >= 2,
                 lambda t: True):
        for t in fitting:                     # descending: biggest tile first
            if cond(t):
                return t
    return fitting[-1]


def dc_fastmri(rec, u_k, mask, w, *, donate_rec=False):
    """rec, u_k: (B, C, H, W); mask: (B, 1, H, 1); w: scalar. Returns (B, C, H, W)."""
    B, C, H, W = rec.shape
    itemsize = rec.dtype.itemsize

    # b*mask, precomputed and lane-broadcast to 128 so each block's mask DMA is
    # a single contiguous burst (instead of tH strided 4-byte transfers).
    b = 1.0 / (1.0 + jnp.asarray(w, dtype=jnp.float32))
    mb = jnp.broadcast_to(mask.astype(jnp.float32) * b, (B, 1, H, 128))

    tH = _choose_h_tile(B, C, H, W, itemsize)
    nH = pl.cdiv(H, tH)                       # ragged last block is masked by Pallas

    vmem_limit = int(_block_vmem_bytes(C, tH, W, itemsize) + 4 * 1024 * 1024)

    return pl.pallas_call(
        _dc_kernel,
        out_shape=jax.ShapeDtypeStruct((B, C, H, W), rec.dtype),
        grid=(B, nH),
        in_specs=[
            pl.BlockSpec((1, C, tH, W), lambda i, h: (i, 0, h, 0)),      # rec
            pl.BlockSpec((1, C, tH, W), lambda i, h: (i, 0, h, 0)),      # u_k
            pl.BlockSpec((1, 1, tH, 128), lambda i, h: (i, 0, h, 0)),    # b*mask
        ],
        out_specs=pl.BlockSpec((1, C, tH, W), lambda i, h: (i, 0, h, 0)),
        compiler_params=pltpu.CompilerParams(
            dimension_semantics=("parallel", "parallel"),
            vmem_limit_bytes=vmem_limit,
        ),
        # Reuse rec's HBM buffer for the output when the caller donates it
        # (saves one (B,C,H,W) allocation per DC layer in an unrolled loop).
        input_output_aliases={0: 0} if donate_rec else {},
    )(rec, u_k, mb)


def dc_fastmri_ref(rec, u_k, mask, w):
    """Pure-JAX reference mirroring the PyTorch forward (is_img=False)."""
    return mask * (rec * w / (1 + w) + u_k * (1 / (w + 1))) + (1 - mask) * rec


if __name__ == "__main__":
    # Deterministic parameter init, matching nn.Parameter(torch.tensor(0.1)).
    w_param = 0.1
    key = jax.random.PRNGKey(0)

    # (B, C, H, W): one divisible case and one ragged-H case (exercises cdiv grid).
    for (B, C, H, W) in [(2, 2, 16, 16), (1, 2, 20, 16)]:
        k1, k2, k3, key = jax.random.split(key, 4)
        rec = jax.random.normal(k1, (B, C, H, W), dtype=jnp.float32)
        u_k = jax.random.normal(k2, (B, C, H, W), dtype=jnp.float32)
        # Binary undersampling mask along H, broadcast over C and W.
        mask = (jax.random.uniform(k3, (B, 1, H, 1)) > 0.5).astype(jnp.float32)

        out = jax.block_until_ready(dc_fastmri(rec, u_k, mask, w_param))
        ref = dc_fastmri_ref(rec, u_k, mask, jnp.float32(w_param))

        assert out.shape == (B, C, H, W)
        assert jnp.allclose(out, ref, atol=1e-5, rtol=1e-5), (B, C, H, W)

    print("KERNEL_OK")
</pallas_src>

<mosaic_0001>
module attributes {stable_mosaic.version = 11 : i64} {
  func.func @_dc_kernel(%arg0: i32, %arg1: i32, %arg2: memref<1x2x8x16xf32, #tpu.memory_space<vmem>>, %arg3: memref<1x2x8x16xf32, #tpu.memory_space<vmem>>, %arg4: memref<1x1x8x128xf32, #tpu.memory_space<vmem>>, %arg5: memref<1x2x8x16xf32, #tpu.memory_space<vmem>>) attributes {dimension_semantics = [#tpu.dimension_semantics<parallel>, #tpu.dimension_semantics<parallel>], iteration_bounds = array<i64: 2, 2>, scalar_prefetch = 0 : i64, scratch_operands = 0 : i64, tpu.core_type = #tpu.core_type<tc>, window_params = [{transform_indices = @transform_0, window_bounds = array<i64: 1, 2, 8, 16>}, {transform_indices = @transform_1, window_bounds = array<i64: 1, 2, 8, 16>}, {transform_indices = @transform_2, window_bounds = array<i64: 1, 1, 8, 128>}, {transform_indices = @transform_3, window_bounds = array<i64: 1, 2, 8, 16>}]} {
    %c0 = arith.constant 0 : index
    %c0_0 = arith.constant 0 : index
    %c0_1 = arith.constant 0 : index
    %c0_2 = arith.constant 0 : index
    %0 = vector.load %arg2[%c0, %c0_0, %c0_1, %c0_2] : memref<1x2x8x16xf32, #tpu.memory_space<vmem>>, vector<1x2x8x16xf32>
    %c0_3 = arith.constant 0 : index
    %c0_4 = arith.constant 0 : index
    %c0_5 = arith.constant 0 : index
    %c0_6 = arith.constant 0 : index
    %1 = vector.load %arg3[%c0_3, %c0_4, %c0_5, %c0_6] : memref<1x2x8x16xf32, #tpu.memory_space<vmem>>, vector<1x2x8x16xf32>
    %c0_7 = arith.constant 0 : index
    %c0_8 = arith.constant 0 : index
    %c0_9 = arith.constant 0 : index
    %c0_10 = arith.constant 0 : index
    %2 = vector.load %arg4[%c0_7, %c0_8, %c0_9, %c0_10] : memref<1x1x8x128xf32, #tpu.memory_space<vmem>>, vector<1x1x8x1xf32>
    %3 = arith.subf %1, %0 : vector<1x2x8x16xf32>
    %4 = vector.broadcast %2 : vector<1x1x8x1xf32> to vector<1x2x8x16xf32>
    %5 = arith.mulf %4, %3 : vector<1x2x8x16xf32>
    %6 = arith.addf %0, %5 : vector<1x2x8x16xf32>
    %c0_11 = arith.constant 0 : index
    %c0_12 = arith.constant 0 : index
    %c0_13 = arith.constant 0 : index
    %c0_14 = arith.constant 0 : index
    %7 = vector.load %arg5[%c0_11, %c0_12, %c0_13, %c0_14] : memref<1x2x8x16xf32, #tpu.memory_space<vmem>>, vector<1x2x8x16xf32>
    tpu.vector_store %arg5[%c0_11, %c0_12, %c0_13, %c0_14], %6 {strides = array<i32>} : memref<1x2x8x16xf32, #tpu.memory_space<vmem>>, vector<1x2x8x16xf32>,
    return
  }
  func.func @transform_0(%arg0: i32, %arg1: i32) -> (i32, i32, i32, i32) {
    %c0_i32 = arith.constant 0 : i32
    %c0_i32_0 = arith.constant 0 : i32
    %c0_i32_1 = arith.constant 0 : i32
    return %arg0, %c0_i32, %arg1, %c0_i32_0 : i32, i32, i32, i32
  }
  func.func @transform_1(%arg0: i32, %arg1: i32) -> (i32, i32, i32, i32) {
    %c0_i32 = arith.constant 0 : i32
    %c0_i32_0 = arith.constant 0 : i32
    %c0_i32_1 = arith.constant 0 : i32
    return %arg0, %c0_i32, %arg1, %c0_i32_0 : i32, i32, i32, i32
  }
  func.func @transform_2(%arg0: i32, %arg1: i32) -> (i32, i32, i32, i32) {
    %c0_i32 = arith.constant 0 : i32
    %c0_i32_0 = arith.constant 0 : i32
    %c0_i32_1 = arith.constant 0 : i32
    return %arg0, %c0_i32, %arg1, %c0_i32_0 : i32, i32, i32, i32
  }
  func.func @transform_3(%arg0: i32, %arg1: i32) -> (i32, i32, i32, i32) {
    %c0_i32 = arith.constant 0 : i32
    %c0_i32_0 = arith.constant 0 : i32
    %c0_i32_1 = arith.constant 0 : i32
    return %arg0, %c0_i32, %arg1, %c0_i32_0 : i32, i32, i32, i32
  }
}

</mosaic_0001>

<llo_original>
// kernel: tpu_custom_call.1
$region0: #{tpu_custom_call.1}
  #allocation0 [shape = 'u32[]', space=smem, size = 0x4, offset = 0x4, fixed_abs, tag = 'smem constant byte address 0x4 - core index']
  #allocation1 [shape = 'u32[72,128]{1,0:T(1,128)}', space=vmem, size = 0x9000, scoped, tag = 'internal scratch']
  %s0 = inlined_call_operand.hbm [shape: f32[2,2,16,16], index: 0, kind: input, shape index: {}]
  %s1 = inlined_call_operand.hbm [shape: f32[2,2,16,16], index: 1, kind: input, shape index: {}]
  %s2 = inlined_call_operand.hbm [shape: f32[2,1,16,128], index: 2, kind: input, shape index: {}]
  %s3 = inlined_call_operand.hbm [shape: f32[2,2,16,16], index: 3, kind: output, shape index: {}]
  %s4 = sld [smem:[#allocation0]]
  $region57: #{tpu_custom_call.1} parent=0
    _
  %s6 = ssub.s32 1, %s4
  %s7 = scalar_select 0, %s6, %s4
  $region1: #{tpu_custom_call.1} parent=0
    #allocation2 [shape = 'u8[16384]{0}', space=vmem, size = 0x4000, scoped, tag = 'input window, operand 0']
    #allocation3 [shape = 's32[2]{0}', space=sflag, size = 0x8, scoped, tag = 'scoped memory for tpu_custom_call.1']
    #allocation4 [shape = 's32[2]{0}', space=sflag, size = 0x8, scoped, tag = 'scoped memory for tpu_custom_call.1']
    #allocation5 [shape = 'u8[16384]{0}', space=vmem, size = 0x4000, scoped, tag = 'input window, operand 1']
    #allocation6 [shape = 's32[2]{0}', space=sflag, size = 0x8, scoped, tag = 'scoped memory for tpu_custom_call.1']
    #allocation7 [shape = 'u8[8192]{0}', space=vmem, size = 0x2000, scoped, tag = 'input window, operand 2']
    #allocation8 [shape = 'u8[16384]{0}', space=vmem, size = 0x4000, scoped, tag = 'output window, operand 0']
    %8 = vsyncpa [#allocation3], 0
    %s9 = scalar_lea.sflag [#allocation3], 1
    %10 = vsyncpa %s9, 0
    %11 = vsyncpa [#allocation6], 0
    %s12 = scalar_lea.sflag [#allocation6], 1
    %13 = vsyncpa %s12, 0
    %14 = vsyncpa [#allocation4], 0
    %s15 = scalar_lea.sflag [#allocation4], 1
    %16 = vsyncpa %s15, 0
    loop: start=0, step=1, limit=6
    $region2: #{tpu_custom_call.1} parent=1 // loop_pre_header
      _
    $region3: #{tpu_custom_call.1} parent=1 // loop_header
      %s18 = sphi 0, %s22
      %p19 = scmp.ge.s32.totalorder %s18, 6
      %s25 = sphi 0, %s37
      %s26 = sphi 0, %s33
      %s27 = sphi 0, %s25
      %s28 = sphi 0, %s26
      %s29 = sphi 0, %s27
      %s30 = sphi 0, %s28
      %s42 = sphi 0, %s44
      %s45 = sphi 0, %s42
      %s46 = sphi 0, %s45
      %s62 = sphi 0, %s46
      %s70 = sphi 0, %s72
      %s73 = sphi 0, %s70
      %s74 = sphi 0, %s73
      %s90 = sphi 0, %s74
      %s98 = sphi 0, %s100
      %s101 = sphi 0, %s98
      %s102 = sphi 0, %s101
      %s118 = sphi 0, %s102
      %s126 = sphi 0, %s128
      %s129 = sphi 0, %s126
      %s130 = sphi 0, %s129
      %s146 = sphi 0, %s130
    $region4: #{tpu_custom_call.1} parent=1 // loop_header_branch
      %21 = sbr.rel (%p19) target = $region8
    $region5: #{tpu_custom_call.1} parent=1 // loop_body
      %s23 = ssub.s32 %s18, 1
      %s24 = ssub.s32 %s18, 2
      %s31 = sadd.s32 1, %s26
      %p32 = scmp.ge.s32.totalorder %s31, 2
      %s33 = scalar_select %p32, 0, %s31
      %s34 = sadd.s32 1, %s25
      %s35 = scalar_select %p32, %s34, %s25
      %p36 = scmp.ge.s32.totalorder %s35, 2
      %s37 = scalar_select %p36, 0, %s35
      %s38 = ssub.s32 %s25, %s37
      %s39 = ssub.s32 %s26, %s33
      %s40 = sor.u32 %s38, %s39
      %p41 = scmp.eq.s32.totalorder %s40, 0
      %s43 = sadd.s32 %s42, 1
      %s44 = scalar_select %p41, %s42, %s43
      %p47 = pneg %p41
      %p48 = scmp.eq.s32.totalorder %s18, 3
      %p49 = por %p47, %p48
      %p50 = scmp.ne.s32.totalorder %s42, %s45
      %p51 = scmp.eq.s32.totalorder %s18, 0
      %p52 = por %p50, %p51
      %p53 = scmp.ne.s32.totalorder %s42, %s45
      %p54 = scmp.eq.s32.totalorder %s23, 3
      %p55 = por %p53, %p54
      %p56 = scmp.ne.s32.totalorder %s45, %s46
      %p57 = scmp.eq.s32.totalorder %s23, 0
      %p58 = por %p56, %p57
      %p59 = scmp.ne.s32.totalorder %s45, %s46
      %p60 = scmp.eq.s32.totalorder %s24, 3
      %p61 = por %p59, %p60
      %p63 = scmp.ne.s32.totalorder %s46, %s62
      %p64 = scmp.eq.s32.totalorder %s24, 0
      %p65 = por %p63, %p64
      %s66 = ssub.s32 %s25, %s37
      %s67 = ssub.s32 %s26, %s33
      %s68 = sor.u32 %s66, %s67
      %p69 = scmp.eq.s32.totalorder %s68, 0
      %s71 = sadd.s32 %s70, 1
      %s72 = scalar_select %p69, %s70, %s71
      %p75 = pneg %p69
      %p76 = scmp.eq.s32.totalorder %s18, 3
      %p77 = por %p75, %p76
      %p78 = scmp.ne.s32.totalorder %s70, %s73
      %p79 = scmp.eq.s32.totalorder %s18, 0
      %p80 = por %p78, %p79
      %p81 = scmp.ne.s32.totalorder %s70, %s73
      %p82 = scmp.eq.s32.totalorder %s23, 3
      %p83 = por %p81, %p82
      %p84 = scmp.ne.s32.totalorder %s73, %s74
      %p85 = scmp.eq.s32.totalorder %s23, 0
      %p86 = por %p84, %p85
      %p87 = scmp.ne.s32.totalorder %s73, %s74
      %p88 = scmp.eq.s32.totalorder %s24, 3
      %p89 = por %p87, %p88
      %p91 = scmp.ne.s32.totalorder %s74, %s90
      %p92 = scmp.eq.s32.totalorder %s24, 0
      %p93 = por %p91, %p92
      %s94 = ssub.s32 %s25, %s37
      %s95 = ssub.s32 %s26, %s33
      %s96 = sor.u32 %s94, %s95
      %p97 = scmp.eq.s32.totalorder %s96, 0
      %s99 = sadd.s32 %s98, 1
      %s100 = scalar_select %p97, %s98, %s99
      %p103 = pneg %p97
      %p104 = scmp.eq.s32.totalorder %s18, 3
      %p105 = por %p103, %p104
      %p106 = scmp.ne.s32.totalorder %s98, %s101
      %p107 = scmp.eq.s32.totalorder %s18, 0
      %p108 = por %p106, %p107
      %p109 = scmp.ne.s32.totalorder %s98, %s101
      %p110 = scmp.eq.s32.totalorder %s23, 3
      %p111 = por %p109, %p110
      %p112 = scmp.ne.s32.totalorder %s101, %s102
      %p113 = scmp.eq.s32.totalorder %s23, 0
      %p114 = por %p112, %p113
      %p115 = scmp.ne.s32.totalorder %s101, %s102
      %p116 = scmp.eq.s32.totalorder %s24, 3
      %p117 = por %p115, %p116
      %p119 = scmp.ne.s32.totalorder %s102, %s118
      %p120 = scmp.eq.s32.totalorder %s24, 0
      %p121 = por %p119, %p120
      %s122 = ssub.s32 %s25, %s37
      %s123 = ssub.s32 %s26, %s33
      %s124 = sor.u32 %s122, %s123
      %p125 = scmp.eq.s32.totalorder %s124, 0
      %s127 = sadd.s32 %s126, 1
      %s128 = scalar_select %p125, %s126, %s127
      %p131 = pneg %p125
      %p132 = scmp.eq.s32.totalorder %s18, 3
      %p133 = por %p131, %p132
      %p134 = scmp.ne.s32.totalorder %s126, %s129
      %p135 = scmp.eq.s32.totalorder %s18, 0
      %p136 = por %p134, %p135
      %p137 = scmp.ne.s32.totalorder %s126, %s129
      %p138 = scmp.eq.s32.totalorder %s23, 3
      %p139 = por %p137, %p138
      %p140 = scmp.ne.s32.totalorder %s129, %s130
      %p141 = scmp.eq.s32.totalorder %s23, 0
      %p142 = por %p140, %p141
      %p143 = scmp.ne.s32.totalorder %s129, %s130
      %p144 = scmp.eq.s32.totalorder %s24, 3
      %p145 = por %p143, %p144
      %p147 = scmp.ne.s32.totalorder %s130, %s146
      %p148 = scmp.eq.s32.totalorder %s24, 0
      %p149 = por %p147, %p148
      %p150 = scmp.le.s32.totalorder 1, %s18
      %p151 = scmp.lt.s32.totalorder %s18, 5
      %p152 = pnand %p150, %p151
      %p153 = pneg %p152
      // Predicated region
      $region9: #{tpu_custom_call.1} parent=5 // pred_check
        _
      $region10: #{tpu_custom_call.1} parent=5 // pred_check_branch
        %155 = sbr.rel (%p152) target = $region12
      $region11: #{tpu_custom_call.1} parent=5 // pred_region
        %s156 = ssub.s32 %s18, 1
      $region12: #{tpu_custom_call.1} parent=5 // pred_fallthru
        _
      %p157 = scmp.lt.s32.totalorder %s18, 4
      // Predicated region
      $region13: #{tpu_custom_call.1} parent=5 // pred_check
        %p158 = pneg %p157
      $region14: #{tpu_custom_call.1} parent=5 // pred_check_branch
        %160 = sbr.rel (%p158) target = $region16
      $region15: #{tpu_custom_call.1} parent=5 // pred_region
        // Predicated region
        $region17: #{tpu_custom_call.1} parent=15 // pred_check
          %p161 = pneg %p52
        $region18: #{tpu_custom_call.1} parent=15 // pred_check_branch
          %163 = sbr.rel (%p161) target = $region20
        $region19: #{tpu_custom_call.1} parent=15 // pred_region
          %s164 = sand.u32 %s42, 1
          %s165 = scalar_lea.sflag [#allocation3], %s164
          %s166 = sand.u32 %s42, 1
          %s167 = smul.addr %s166, 16
          %s168 = scalar_lea.vmem [#allocation2], %s167
          %170 = vsyncadd %s165, 0
          %s171 = smul.addr %s25, 4
          %s172 = sadd.s32 %s26, %s171
          %s173 = smul.addr %s172, 8
          %s174 = scalar_lea.hbm %s0, %s173
          %s175 = sshll.u32 %s174, 4
          %s176 = int_to_ptr.hbm [resolvable:$true] %s175
          %s177 = sshll.u32 %s168, 4
          %s178 = int_to_ptr.vmem [resolvable:$true] %s177
          %183 = dma.hbm_to_vmem [thread:$0]  %s176, 256, %s178, %s165, 256, 128, 8
        $region20: #{tpu_custom_call.1} parent=15 // pred_fallthru
          _
        // Predicated region
        $region21: #{tpu_custom_call.1} parent=15 // pred_check
          %p184 = pneg %p80
        $region22: #{tpu_custom_call.1} parent=15 // pred_check_branch
          %186 = sbr.rel (%p184) target = $region24
        $region23: #{tpu_custom_call.1} parent=15 // pred_region
          %s187 = sand.u32 %s18, 1
          %s188 = scalar_lea.sflag [#allocation6], %s187
          %s189 = sand.u32 %s70, 1
          %s190 = smul.addr %s189, 16
          %s191 = scalar_lea.vmem [#allocation5], %s190
          %193 = vsyncadd %s188, 0
          %s194 = smul.addr %s25, 4
          %s195 = sadd.s32 %s26, %s194
          %s196 = smul.addr %s195, 8
          %s197 = scalar_lea.hbm %s1, %s196
          %s198 = sshll.u32 %s197, 4
          %s199 = int_to_ptr.hbm [resolvable:$true] %s198
          %s200 = sshll.u32 %s191, 4
          %s201 = int_to_ptr.vmem [resolvable:$true] %s200
          %206 = dma.hbm_to_vmem [thread:$0]  %s199, 256, %s201, %s188, 256, 128, 8
        $region24: #{tpu_custom_call.1} parent=15 // pred_fallthru
          _
        // Predicated region
        $region25: #{tpu_custom_call.1} parent=15 // pred_check
          %p207 = pneg %p108
        $region26: #{tpu_custom_call.1} parent=15 // pred_check_branch
          %209 = sbr.rel (%p207) target = $region28
        $region27: #{tpu_custom_call.1} parent=15 // pred_region
          %s210 = sand.u32 %s18, 1
          %s211 = scalar_lea.sflag [#allocation6], %s210
          %s212 = sand.u32 %s98, 1
          %s213 = smul.addr %s212, 8
          %s214 = scalar_lea.vmem [#allocation7], %s213
          %216 = vsyncadd %s211, 0
          %s217 = smul.addr %s25, 2
          %s218 = sadd.s32 %s26, %s217
          %s219 = smul.addr %s218, 8
          %s220 = scalar_lea.hbm %s2, %s219
          %s222 = sshll.u32 %s220, 4
          %s223 = int_to_ptr.hbm [resolvable:$true] %s222
          %s224 = sshll.u32 %s214, 4
          %s225 = int_to_ptr.vmem [resolvable:$true] %s224
          %227 = dma.hbm_to_vmem [thread:$0]  %s223, 128, %s225, %s211
        $region28: #{tpu_custom_call.1} parent=15 // pred_fallthru
          _
      $region16: #{tpu_custom_call.1} parent=5 // pred_fallthru
        _
      %p228 = scmp.le.s32.totalorder 1, %s18
      %p229 = scmp.lt.s32.totalorder %s18, 5
      %p230 = pnand %p228, %p229
      %p231 = pneg %p230
      // Predicated region
      $region29: #{tpu_custom_call.1} parent=5 // pred_check
        _
      $region30: #{tpu_custom_call.1} parent=5 // pred_check_branch
        %233 = sbr.rel (%p230) target = $region32
      $region31: #{tpu_custom_call.1} parent=5 // pred_region
        %s234 = ssub.s32 %s18, 1
        %s235 = sand.u32 %s45, 1
        %s236 = scalar_lea.sflag [#allocation3], %s235
        %s237 = sand.u32 %s45, 1
        %s238 = smul.addr %s237, 16
        %s239 = scalar_lea.vmem [#allocation2], %s238
        // Predicated region
        $region33: #{tpu_custom_call.1} parent=31 // pred_check
          %p240 = pneg %p58
        $region34: #{tpu_custom_call.1} parent=31 // pred_check_branch
          %242 = sbr.rel (%p240) target = $region36
        $region35: #{tpu_custom_call.1} parent=31 // pred_region
          %244 = dma.done %s236, 256
        $region36: #{tpu_custom_call.1} parent=31 // pred_fallthru
          _
        %s245 = sand.u32 %s23, 1
        %s246 = scalar_lea.sflag [#allocation6], %s245
        %s247 = sand.u32 %s73, 1
        %s248 = smul.addr %s247, 16
        %s249 = scalar_lea.vmem [#allocation5], %s248
        // Predicated region
        $region37: #{tpu_custom_call.1} parent=31 // pred_check
          %p250 = pneg %p86
        $region38: #{tpu_custom_call.1} parent=31 // pred_check_branch
          %252 = sbr.rel (%p250) target = $region40
        $region39: #{tpu_custom_call.1} parent=31 // pred_region
          %254 = dma.done %s246, 256
        $region40: #{tpu_custom_call.1} parent=31 // pred_fallthru
          _
        %s255 = sand.u32 %s23, 1
        %s256 = scalar_lea.sflag [#allocation6], %s255
        %s257 = sand.u32 %s101, 1
        %s258 = smul.addr %s257, 8
        %s259 = scalar_lea.vmem [#allocation7], %s258
        // Predicated region
        $region41: #{tpu_custom_call.1} parent=31 // pred_check
          %p260 = pneg %p114
        $region42: #{tpu_custom_call.1} parent=31 // pred_check_branch
          %262 = sbr.rel (%p260) target = $region44
        $region43: #{tpu_custom_call.1} parent=31 // pred_region
          %264 = dma.done %s256, 128
        $region44: #{tpu_custom_call.1} parent=31 // pred_fallthru
          _
        %s265 = sand.u32 %s45, 1
        %s266 = scalar_lea.sflag [#allocation3], %s265
        %s267 = sand.u32 %s45, 1
        %s268 = smul.addr %s267, 16
        %s269 = scalar_lea.vmem [#allocation2], %s268
        %p270 = pneg %p58
        %p271 = pneg %p55
        %s272 = sand.u32 %s23, 1
        %s273 = scalar_lea.sflag [#allocation6], %s272
        %s274 = sand.u32 %s73, 1
        %s275 = smul.addr %s274, 16
        %s276 = scalar_lea.vmem [#allocation5], %s275
        %p277 = pneg %p86
        %p278 = pneg %p83
        %s279 = sand.u32 %s23, 1
        %s280 = scalar_lea.sflag [#allocation6], %s279
        %s281 = sand.u32 %s101, 1
        %s282 = smul.addr %s281, 8
        %s283 = scalar_lea.vmem [#allocation7], %s282
        %p284 = pneg %p114
        %p285 = pneg %p111
        %p286 = pneg %p142
        %p287 = pneg %p139
        %s288 = sand.u32 %s129, 1
        %s289 = scalar_lea.sflag [#allocation4], %s288
        %s290 = sand.u32 %s129, 1
        %s291 = smul.addr %s290, 16
        %s292 = scalar_lea.vmem [#allocation8], %s291
        %v293 = vld [vmem:[%s239] sm:$0xff]
        %v294 = vld [vmem:[%s239 + $0x8] sm:$0xff]
        %v295 = vld [vmem:[%s249] sm:$0xff]
        %v296 = vld [vmem:[%s249 + $0x8] sm:$0xff]
        %v297 = vld [vmem:[%s259] sm:$0xff]
        %v298 = vsub.f32 %v295, %v293
        %v299 = vsub.f32 %v296, %v294
        %301 = vset.pattern.permute.xlu0 0
        %302 = vperm.xlu0 %301, %v297
        %v303 = vpop.permute.xlu0 %302
        %v305 = vmul.f32 %v303, %v298
        %v306 = vmul.f32 %v303, %v299
        %v307 = vadd.f32 %v293, %v305
        %v308 = vadd.f32 %v294, %v306
        %vm309 = vcmask 130048
        %310 = vst.msk [vmem:[%s292] sm:$0xff] %vm309, %v307
        %311 = vst.msk [vmem:[%s292 + $0x8] sm:$0xff] %vm309, %v308
        %s312 = sand.u32 %s129, 1
        %s313 = scalar_lea.sflag [#allocation4], %s312
        %s314 = sand.u32 %s129, 1
        %s315 = smul.addr %s314, 16
        %s316 = scalar_lea.vmem [#allocation8], %s315
        // Predicated region
        $region45: #{tpu_custom_call.1} parent=31 // pred_check
          %p317 = pneg %p139
        $region46: #{tpu_custom_call.1} parent=31 // pred_check_branch
          %319 = sbr.rel (%p317) target = $region48
        $region47: #{tpu_custom_call.1} parent=31 // pred_region
          %321 = vsyncadd %s313, 0
          %s322 = smul.addr %s27, 4
          %s323 = sadd.s32 %s28, %s322
          %s324 = smul.addr %s323, 8
          %s325 = scalar_lea.hbm %s3, %s324
          %s326 = sshll.u32 %s316, 4
          %s327 = int_to_ptr.vmem [resolvable:$true] %s326
          %s328 = sshll.u32 %s325, 4
          %s329 = int_to_ptr.hbm [resolvable:$true] %s328
          %334 = dma.vmem_to_hbm [thread:$0]  %s327, 256, %s329, %s313, 128, 256, 8
        $region48: #{tpu_custom_call.1} parent=31 // pred_fallthru
          _
      $region32: #{tpu_custom_call.1} parent=5 // pred_fallthru
        _
      %p335 = scmp.le.s32.totalorder 2, %s18
      // Predicated region
      $region49: #{tpu_custom_call.1} parent=5 // pred_check
        %p336 = pneg %p335
      $region50: #{tpu_custom_call.1} parent=5 // pred_check_branch
        %338 = sbr.rel (%p336) target = $region52
      $region51: #{tpu_custom_call.1} parent=5 // pred_region
        %s339 = ssub.s32 %s18, 2
        // Predicated region
        $region53: #{tpu_custom_call.1} parent=51 // pred_check
          %p340 = pneg %p145
        $region54: #{tpu_custom_call.1} parent=51 // pred_check_branch
          %342 = sbr.rel (%p340) target = $region56
        $region55: #{tpu_custom_call.1} parent=51 // pred_region
          %s343 = sand.u32 %s130, 1
          %s344 = scalar_lea.sflag [#allocation4], %s343
          %s345 = sand.u32 %s130, 1
          %s346 = smul.addr %s345, 16
          %s347 = scalar_lea.vmem [#allocation8], %s346
          %349 = dma.done %s344, 256
        $region56: #{tpu_custom_call.1} parent=51 // pred_fallthru
          _
      $region52: #{tpu_custom_call.1} parent=5 // pred_fallthru
        _
    $region6: #{tpu_custom_call.1} parent=1 // loop_footer
      %s22 = sadd.s32 1, %s18
    $region7: #{tpu_custom_call.1} parent=1 // loop_footer_branch
      %17 = sbr.rel target = $region3
    $region8: #{tpu_custom_call.1} parent=1 // loop_exit
      _
    %350 = vsyncpa [#allocation3], 1
    %s351 = scalar_lea.sflag [#allocation3], 1
    %352 = vsyncpa %s351, 1
    %353 = vsyncpa [#allocation6], 1
    %s354 = scalar_lea.sflag [#allocation6], 1
    %355 = vsyncpa %s354, 1
    %356 = vsyncpa [#allocation4], 1
    %s357 = scalar_lea.sflag [#allocation4], 1
    %358 = vsyncpa %s357, 1

</llo_original>
